<compile_context>
chip_gen: v7x
topology: tpu7x:2x2x1
jax: 0.10.0
libtpu: 0.0.40
codegen_flags: <defaults>
</compile_context>

<pallas_src>
import jax
import jax.numpy as jnp
from jax.experimental import pallas as pl
from jax.experimental.pallas import tpu as pltpu

_MIB = 1024 * 1024
_LANES = (8192, 4096, 2048, 1024, 512, 256, 128)
_SUM_SPLITS = 2  # v7x has 2 TensorCores; the extra split is harmless on 1-TC chips.


def _round_up(v, m):
    return -(-v // m) * m


def _physical_vmem_bytes():
    """Per-TensorCore VMEM capacity (best effort, conservative on failure)."""
    phys = 0
    try:
        phys = int(pltpu.get_tpu_info().vmem_capacity_bytes)
    except Exception:
        phys = 0
    kind = ""
    try:
        kind = jax.devices()[0].device_kind.lower()
    except Exception:
        pass
    if phys <= 0:
        phys = 128 * _MIB if any(t in kind for t in ("v4", "v5", "v6")) else 64 * _MIB
    if "7" in kind:          # v7x: 64 MiB per TensorCore -- never assume more.
        phys = min(phys, 64 * _MIB)
    return min(phys, 128 * _MIB)


def _vmem_budget_bytes():
    """vmem_limit_bytes we request: 3/4 of physical, capped at 100 MiB."""
    return min(_physical_vmem_bytes() * 3 // 4, 100 * _MIB)


def _best_tile(rows, mult, cap):
    """Largest divisor of `rows` that is a multiple of `mult` and <= cap."""
    best = None
    i = 1
    while i * i <= rows:
        if rows % i == 0:
            for d in (i, rows // i):
                if d <= cap and d % mult == 0 and (best is None or d > best):
                    best = d
        i += 1
    return best


# ----------------------------------------------------------------------------
# Kernels
# ----------------------------------------------------------------------------
def _fused_kernel_factory(inv_n):
    def kernel(x_ref, o_ref):
        xv = x_ref[...].astype(jnp.float32)
        mean = jnp.sum(xv) * inv_n           # inv_n is a trace-time constant
        o_ref[...] = (xv - mean).astype(o_ref.dtype)
    return kernel


def _sum_kernel_factory(inv_n):
    """Pass 1: per-split partial mean.  Grid = (splits, inner); the inner axis
    is the reduction ('arbitrary'), the outer axis is 'parallel' so v7x shards
    the two partial sums across its TensorCores."""
    def kernel(x_ref, psum_ref):
        @pl.when(pl.program_id(1) == 0)
        def _init():
            psum_ref[...] = jnp.zeros_like(psum_ref)

        psum_ref[...] += jnp.sum(x_ref[...].astype(jnp.float32))

        @pl.when(pl.program_id(1) == pl.num_programs(1) - 1)
        def _finalize():
            psum_ref[...] = psum_ref[...] * inv_n    # fold 1/n into pass 1
    return kernel


def _sub_kernel_factory(num_splits):
    """Pass 2: subtract the mean (sum of SMEM-resident partial means)."""
    def kernel(mean_ref, x_ref, o_ref):
        mean = mean_ref[0, 0]
        for c in range(1, num_splits):               # unrolled at trace time
            mean = mean + mean_ref[c, 0]
        o_ref[...] = (x_ref[...].astype(jnp.float32) - mean).astype(o_ref.dtype)
    return kernel


# ----------------------------------------------------------------------------
# pallas_call wrappers (all slabs are 2-D, tiled along axis 0 only)
# ----------------------------------------------------------------------------
def _centered_fused(slab, n_true, vmem_limit):
    """Single-block fused mean + subtract: 2N bytes of HBM traffic."""
    rows, cols = slab.shape
    itemsize = jnp.dtype(slab.dtype).itemsize
    nbytes = slab.size * itemsize
    inv_n = 1.0 / float(n_true)
    return pl.pallas_call(
        _fused_kernel_factory(inv_n),
        out_shape=jax.ShapeDtypeStruct(slab.shape, slab.dtype),
        grid=(1,),
        in_specs=[pl.BlockSpec((rows, cols), lambda i: (0, 0))],
        out_specs=pl.BlockSpec((rows, cols), lambda i: (0, 0)),
        compiler_params=pltpu.CompilerParams(
            dimension_semantics=("arbitrary",),
            vmem_limit_bytes=vmem_limit),
        cost_estimate=pl.CostEstimate(
            flops=2 * slab.size, transcendentals=0, bytes_accessed=2 * nbytes),
    )(slab)


def _centered_two_pass(slab, n_true, tile_rows, vmem_limit):
    """Tiled two-pass path: pipelined sum (split across cores) + subtract."""
    rows, cols = slab.shape
    dtype = slab.dtype
    itemsize = jnp.dtype(dtype).itemsize
    nbytes = slab.size * itemsize
    grid_r = rows // tile_rows
    num_splits = _SUM_SPLITS if (grid_r % _SUM_SPLITS == 0
                                 and grid_r >= 2 * _SUM_SPLITS) else 1
    inner = grid_r // num_splits
    inv_n = 1.0 / float(n_true)

    # Pass 1: per-split partial means (f32 accumulation, resident (1,1) block).
    partial_means = pl.pallas_call(
        _sum_kernel_factory(inv_n),
        out_shape=jax.ShapeDtypeStruct((num_splits, 1), jnp.float32),
        grid=(num_splits, inner),
        in_specs=[pl.BlockSpec((tile_rows, cols),
                               lambda c, i: (c * inner + i, 0))],
        out_specs=pl.BlockSpec((1, 1), lambda c, i: (c, 0)),
        compiler_params=pltpu.CompilerParams(
            dimension_semantics=("parallel", "arbitrary"),
            vmem_limit_bytes=vmem_limit),
        cost_estimate=pl.CostEstimate(
            flops=slab.size, transcendentals=0,
            bytes_accessed=nbytes + 4 * num_splits),
    )(slab)

    # Pass 2: tiled, pipelined subtract.  Partial means live in SMEM (cheap
    # scalar loads, keeps vld slots for the streaming tile); 'parallel' lets
    # v7x shard the grid across both cores.
    return pl.pallas_call(
        _sub_kernel_factory(num_splits),
        out_shape=jax.ShapeDtypeStruct(slab.shape, dtype),
        grid=(grid_r,),
        in_specs=[pl.BlockSpec(memory_space=pltpu.MemorySpace.SMEM),
                  pl.BlockSpec((tile_rows, cols), lambda i: (i, 0))],
        out_specs=pl.BlockSpec((tile_rows, cols), lambda i: (i, 0)),
        compiler_params=pltpu.CompilerParams(
            dimension_semantics=("parallel",),
            vmem_limit_bytes=vmem_limit),
        cost_estimate=pl.CostEstimate(
            flops=slab.size, transcendentals=0,
            bytes_accessed=2 * nbytes + 4 * num_splits),
    )(partial_means, slab)


# ----------------------------------------------------------------------------
# Public wrapper
# ----------------------------------------------------------------------------
def centered_layer(x):
    """Pallas TPU equivalent of CenteredLayer.forward: x - x.mean()."""
    if not jnp.issubdtype(x.dtype, jnp.floating):
        # torch.mean also rejects integer tensors.
        raise TypeError("CenteredLayer requires a floating-point input dtype")
    orig_shape = x.shape
    n = int(x.size)
    if n == 0:
        return x
    dtype = jnp.dtype(x.dtype)
    itemsize = dtype.itemsize
    sublane_mult = 8 * max(1, 4 // itemsize)      # 8 f32 / 16 bf16 / 32 fp8
    budget = _vmem_budget_bytes()
    max_block = min(8 * _MIB, budget // 8)        # pass-2 footprint ~4-6x block
    fused_limit = budget // 7                     # fused footprint ~5-6x input

    # --- Preferred: lane-dense (rows, lane) view (free reshape), lane % 128 == 0.
    lane_choices = [l for l in _LANES if n % l == 0]
    if lane_choices:
        if n * itemsize <= fused_limit:
            lane = lane_choices[0]
            slab = x.reshape(n // lane, lane)
            return _centered_fused(slab, n, budget).reshape(orig_shape)
        best = None
        for lane in lane_choices:
            rows = n // lane
            max_tr = (max_block // (lane * itemsize)) // sublane_mult * sublane_mult
            if max_tr < sublane_mult:
                continue
            tile = _best_tile(rows, sublane_mult, max_tr)
            if tile is None:
                continue
            if best is None or tile * lane > best[1] * best[0]:
                best = (lane, tile)
        if best is not None:
            lane, tile = best
            slab = x.reshape(n // lane, lane)
            return _centered_two_pass(slab, n, tile, budget).reshape(orig_shape)

    # --- Awkward total size (or no clean lane tiling): keep the original
    # trailing dim.  Blocks spanning full trailing dims need no (8,128)
    # alignment, so there is no pad / slice HBM round trip on this path.
    cols = orig_shape[-1] if x.ndim >= 2 else n
    rows = n // cols
    padded_cols = _round_up(cols, 128)
    padded_bytes = _round_up(rows, sublane_mult) * padded_cols * itemsize
    if padded_bytes <= fused_limit:
        slab = x.reshape(rows, cols)
        return _centered_fused(slab, n, budget).reshape(orig_shape)
    if x.ndim >= 2 and cols * itemsize >= 256:    # keep DMA runs reasonable
        max_tr = (max_block // (padded_cols * itemsize)) // sublane_mult * sublane_mult
        if max_tr >= sublane_mult:
            tile = _best_tile(rows, sublane_mult, max_tr)
            if tile is not None:
                slab = x.reshape(rows, cols)
                return _centered_two_pass(slab, n, tile, budget).reshape(orig_shape)

    # --- Last resort: pad the flat view to a whole number of blocks.  Zero
    # padding never biases the mean (we divide by the true n), but it costs an
    # extra HBM round trip for the pad and the final slice.
    # TODO(synk): mask the ragged tail in-kernel (iota + where / masked store)
    # to drop this residual pad path entirely.
    lane = 512
    tile = max(sublane_mult,
               (max_block // (lane * itemsize)) // sublane_mult * sublane_mult)
    block_elems = lane * tile
    n_pad = _round_up(n, block_elems)
    flat = jnp.pad(jnp.ravel(x), (0, n_pad - n))
    slab = flat.reshape(n_pad // lane, lane)
    if n_pad == block_elems:
        out = _centered_fused(slab, n, budget)
    else:
        out = _centered_two_pass(slab, n, tile, budget)
    return jnp.ravel(out)[:n].reshape(orig_shape)


if __name__ == "__main__":
    centered = jax.jit(centered_layer)

    # Primary example: small NCHW input (batch=2, channels=4, 16x16 spatial).
    x = jax.random.normal(jax.random.PRNGKey(0), (2, 4, 16, 16), dtype=jnp.float32)
    y = jax.block_until_ready(centered(x))
    ref = x - jnp.mean(x)
    assert y.shape == x.shape and y.dtype == x.dtype
    assert jnp.allclose(y, ref, atol=1e-5, rtol=1e-5), "mismatch (small input)"
    assert abs(float(jnp.mean(y))) < 1e-5

    # 1-D input, like the canonical CenteredLayer([1..5]) usage (awkward size,
    # handled with a full-dim block, no pad/slice round trip).
    x1 = jnp.arange(1.0, 6.0, dtype=jnp.float32)
    y1 = jax.block_until_ready(centered(x1))
    assert jnp.allclose(y1, x1 - jnp.mean(x1), atol=1e-5, rtol=1e-5), "mismatch (1-D)"

    # Awkward total size with ndim >= 2: no-pad slab path on the original
    # trailing dim.
    xa = jax.random.normal(jax.random.PRNGKey(1), (10, 7, 9), dtype=jnp.float32)
    ya = jax.block_until_ready(centered(xa))
    assert jnp.allclose(ya, xa - jnp.mean(xa), atol=1e-5, rtol=1e-5), "mismatch (awkward)"

    # bf16 I/O (HBM stays bf16, accumulation/subtract in f32 inside the kernel).
    xb = jax.random.normal(jax.random.PRNGKey(2), (2, 4, 16, 16), dtype=jnp.bfloat16)
    yb = jax.block_until_ready(centered(xb))
    refb = (xb.astype(jnp.float32) - jnp.mean(xb.astype(jnp.float32)))
    assert yb.dtype == jnp.bfloat16
    assert jnp.allclose(yb.astype(jnp.float32), refb, atol=6e-2, rtol=6e-2), "mismatch (bf16)"

    # Exercise the tiled two-pass path (split partial sums + SMEM mean plumbing)
    # directly on a small slab so it runs on every generation regardless of the
    # fused-threshold heuristics.
    xs = jax.random.normal(jax.random.PRNGKey(3), (1024, 512), dtype=jnp.float32)
    ys = jax.block_until_ready(
        _centered_two_pass(xs, xs.size, 128, _vmem_budget_bytes()))
    assert jnp.allclose(ys, xs - jnp.mean(xs), atol=1e-5, rtol=1e-5), "mismatch (two-pass)"

    print("KERNEL_OK")
</pallas_src>

<mosaic_0001>
module attributes {stable_mosaic.version = 11 : i64} {
  func.func @kernel(%arg0: i32, %arg1: memref<1x2048xf32, #tpu.memory_space<vmem>>, %arg2: memref<1x2048xf32, #tpu.memory_space<vmem>>) attributes {dimension_semantics = [#tpu.dimension_semantics<arbitrary>], iteration_bounds = array<i64: 1>, scalar_prefetch = 0 : i64, scratch_operands = 0 : i64, tpu.core_type = #tpu.core_type<tc>, window_params = [{pipeline_mode = #tpu.pipeline_mode<synchronous>, transform_indices = @transform_0, window_bounds = array<i64: 1, 2048>}, {pipeline_mode = #tpu.pipeline_mode<synchronous>, transform_indices = @transform_1, window_bounds = array<i64: 1, 2048>}]} {
    %c0 = arith.constant 0 : index
    %c0_0 = arith.constant 0 : index
    %0 = vector.load %arg1[%c0, %c0_0] : memref<1x2048xf32, #tpu.memory_space<vmem>>, vector<1x2048xf32>
    %1 = vector.shape_cast %0 : vector<1x2048xf32> to vector<1x1x2048xf32>
    %cst = arith.constant dense<0.000000e+00> : vector<1xf32>
    %2 = vector.multi_reduction <add>, %1, %cst [1, 2] : vector<1x1x2048xf32> to vector<1xf32>
    %3 = vector.shape_cast %2 : vector<1xf32> to vector<1x1x1xf32>
    %4 = vector.extract %3[0, 0, 0] : f32 from vector<1x1x1xf32>
    %cst_1 = arith.constant 4.8828125E-4 : f32
    %5 = arith.mulf %4, %cst_1 : f32
    %6 = vector.broadcast %5 : f32 to vector<1x2048xf32>
    %7 = arith.subf %0, %6 : vector<1x2048xf32>
    %c0_2 = arith.constant 0 : index
    %c0_3 = arith.constant 0 : index
    %8 = vector.load %arg2[%c0_2, %c0_3] : memref<1x2048xf32, #tpu.memory_space<vmem>>, vector<1x2048xf32>
    tpu.vector_store %arg2[%c0_2, %c0_3], %7 {strides = array<i32>} : memref<1x2048xf32, #tpu.memory_space<vmem>>, vector<1x2048xf32>,
    return
  }
  func.func @transform_0(%arg0: i32) -> (i32, i32) {
    %c0_i32 = arith.constant 0 : i32
    %c0_i32_0 = arith.constant 0 : i32
    %c0_i32_1 = arith.constant 0 : i32
    return %c0_i32, %c0_i32_0 : i32, i32
  }
  func.func @transform_1(%arg0: i32) -> (i32, i32) {
    %c0_i32 = arith.constant 0 : i32
    %c0_i32_0 = arith.constant 0 : i32
    %c0_i32_1 = arith.constant 0 : i32
    return %c0_i32, %c0_i32_0 : i32, i32
  }
}

</mosaic_0001>

<llo_original>
// kernel: centered_layer.1
$region0: #{centered_layer.1}
  #allocation0 [shape = 'u32[]', space=smem, size = 0x4, offset = 0x4, fixed_abs, tag = 'smem constant byte address 0x4 - core index']
  #allocation1 [shape = 'u32[144,128]{1,0:T(1,128)}', space=vmem, size = 0x12000, scoped, tag = 'internal scratch']
  %s0 = inlined_call_operand.vmem [shape: f32[1,2048], index: 0, kind: input, shape index: {}]
  %s1 = inlined_call_operand.vmem [shape: f32[1,2048], index: 1, kind: output, shape index: {}]
  %s2 = sld [smem:[#allocation0]]
  $region14: #{centered_layer.1} parent=0
    _
  %s4 = ssub.s32 1, %s2
  %s5 = scalar_select 0, %s4, %s2
  // Predicated region
  $region2: #{centered_layer.1} parent=0 // pred_check
    _
  $region3: #{centered_layer.1} parent=0 // pred_check_branch
    %7 = sbr.rel (0) target = $region5
  $region4: #{centered_layer.1} parent=0 // pred_region
    _
  $region5: #{centered_layer.1} parent=0 // pred_fallthru
    _
  %v8 = vld [vmem:[%s0] sm:$0xff]
  %v9 = vld [vmem:[%s0 + $0x8] sm:$0xff]
  %v12 = vlaneseq
  %v13 = vshrl.u32 %v12, 7
  %v14 = vsub.s32 0, %v13
  %v15 = vrot.slane %v8, %v14
  %v16 = vlaneseq
  %v17 = vshrl.u32 %v16, 7
  %v18 = vsub.s32 1, %v17
  %v19 = vrot.slane %v8, %v18
  %v20 = vlaneseq
  %v21 = vshrl.u32 %v20, 7
  %v22 = vsub.s32 2, %v21
  %v23 = vrot.slane %v8, %v22
  %v24 = vlaneseq
  %v25 = vshrl.u32 %v24, 7
  %v26 = vsub.s32 3, %v25
  %v27 = vrot.slane %v8, %v26
  %v28 = vlaneseq
  %v29 = vshrl.u32 %v28, 7
  %v30 = vsub.s32 4, %v29
  %v31 = vrot.slane %v8, %v30
  %v32 = vlaneseq
  %v33 = vshrl.u32 %v32, 7
  %v34 = vsub.s32 5, %v33
  %v35 = vrot.slane %v8, %v34
  %v36 = vlaneseq
  %v37 = vshrl.u32 %v36, 7
  %v38 = vsub.s32 6, %v37
  %v39 = vrot.slane %v8, %v38
  %v40 = vlaneseq
  %v41 = vshrl.u32 %v40, 7
  %v42 = vsub.s32 7, %v41
  %v43 = vrot.slane %v8, %v42
  %v44 = vlaneseq
  %v45 = vshrl.u32 %v44, 7
  %v46 = vsub.s32 0, %v45
  %v47 = vrot.slane %v9, %v46
  %v48 = vlaneseq
  %v49 = vshrl.u32 %v48, 7
  %v50 = vsub.s32 1, %v49
  %v51 = vrot.slane %v9, %v50
  %v52 = vlaneseq
  %v53 = vshrl.u32 %v52, 7
  %v54 = vsub.s32 2, %v53
  %v55 = vrot.slane %v9, %v54
  %v56 = vlaneseq
  %v57 = vshrl.u32 %v56, 7
  %v58 = vsub.s32 3, %v57
  %v59 = vrot.slane %v9, %v58
  %v60 = vlaneseq
  %v61 = vshrl.u32 %v60, 7
  %v62 = vsub.s32 4, %v61
  %v63 = vrot.slane %v9, %v62
  %v64 = vlaneseq
  %v65 = vshrl.u32 %v64, 7
  %v66 = vsub.s32 5, %v65
  %v67 = vrot.slane %v9, %v66
  %v68 = vlaneseq
  %v69 = vshrl.u32 %v68, 7
  %v70 = vsub.s32 6, %v69
  %v71 = vrot.slane %v9, %v70
  %v72 = vlaneseq
  %v73 = vshrl.u32 %v72, 7
  %v74 = vsub.s32 7, %v73
  %v75 = vrot.slane %v9, %v74
  %vm92 = vcmask 1040384
  %v93 = vsel %vm92, %v15, 0.0
  %v94 = vsel %vm92, %v19, 0.0
  %v95 = vadd.f32 %v93, %v94
  %v96 = vsel %vm92, %v23, 0.0
  %v97 = vadd.f32 %v95, %v96
  %v98 = vsel %vm92, %v27, 0.0
  %v99 = vadd.f32 %v97, %v98
  %v100 = vsel %vm92, %v31, 0.0
  %v101 = vadd.f32 %v99, %v100
  %v102 = vsel %vm92, %v35, 0.0
  %v103 = vadd.f32 %v101, %v102
  %v104 = vsel %vm92, %v39, 0.0
  %v105 = vadd.f32 %v103, %v104
  %v106 = vsel %vm92, %v43, 0.0
  %v107 = vadd.f32 %v105, %v106
  %v108 = vsel %vm92, %v47, 0.0
  %v109 = vadd.f32 %v107, %v108
  %v110 = vsel %vm92, %v51, 0.0
  %v111 = vadd.f32 %v109, %v110
  %v112 = vsel %vm92, %v55, 0.0
  %v113 = vadd.f32 %v111, %v112
  %v114 = vsel %vm92, %v59, 0.0
  %v115 = vadd.f32 %v113, %v114
  %v116 = vsel %vm92, %v63, 0.0
  %v117 = vadd.f32 %v115, %v116
  %v118 = vsel %vm92, %v67, 0.0
  %v119 = vadd.f32 %v117, %v118
  %v120 = vsel %vm92, %v71, 0.0
  %v121 = vadd.f32 %v119, %v120
  %v122 = vsel %vm92, %v75, 0.0
  %v123 = vadd.f32 %v121, %v122
  %124 = vadd.xlane.f32.xlu0 %v123
  %v125 = vpop.xlane.xlu0 %124
  %v126 = vrot.slane %v125, 4
  %v127 = vadd.f32 %v125, %v126
  %v128 = vrot.slane %v127, 2
  %v129 = vadd.f32 %v127, %v128
  %v130 = vrot.slane %v129, 1
  %v131 = vadd.f32 %v129, %v130
  %s132 = vtos %v131
  %s133 = smul.f32 %s132, 0.00048828125
  %v134 = vstv %s133
  %v135 = vsub.f32 %v8, %v134
  %v136 = vsub.f32 %v9, %v134
  %137 = vst [vmem:[%s1] sm:$0xff] %v135
  %138 = vst [vmem:[%s1 + $0x8] sm:$0xff] %v136
  // Predicated region
  $region6: #{centered_layer.1} parent=0 // pred_check
    _
  $region7: #{centered_layer.1} parent=0 // pred_check_branch
    %140 = sbr.rel (0) target = $region9
  $region8: #{centered_layer.1} parent=0 // pred_region
    _
  $region9: #{centered_layer.1} parent=0 // pred_fallthru
    _
  // Predicated region
  $region10: #{centered_layer.1} parent=0 // pred_check
    _
  $region11: #{centered_layer.1} parent=0 // pred_check_branch
    %142 = sbr.rel (0) target = $region13
  $region12: #{centered_layer.1} parent=0 // pred_region
    _
  $region13: #{centered_layer.1} parent=0 // pred_fallthru
    _

</llo_original>
